<compile_context>
chip_gen: v7x
topology: tpu7x:2x2x1
jax: 0.10.0
libtpu: 0.0.40
codegen_flags: <defaults>
</compile_context>

<pallas_src>
import jax
import jax.numpy as jnp
from jax.experimental import pallas as pl
from jax.experimental.pallas import tpu as pltpu

_LANES = 128
_SUBLANES = 8


def _round_up(x, m):
    return ((x + m - 1) // m) * m


def uifm_loss(raw, output, tm1, tm2, b, *, block_rows=4096):
    """Pallas equivalent of UIFMLoss().forward(raw, output, tm1, tm2, b)."""
    shape = raw.shape
    n = int(raw.size)                        # static true element count
    f32 = jnp.float32

    # Lane-dense presentation: (rows8, 128), rows8 a multiple of 8.
    rows = pl.cdiv(n, _LANES)
    rows8 = _round_up(rows, _SUBLANES)
    host_pad = rows8 * _LANES - n            # 0 whenever n % 1024 == 0

    br = min(_round_up(max(block_rows, _SUBLANES), _SUBLANES), rows8)
    grid = pl.cdiv(rows8, br)

    def prep(t):
        # broadcast_to is a no-op when t already has raw's shape.
        t = jnp.broadcast_to(t, shape).reshape(-1)
        if host_pad:
            # Only hit when n % 1024 != 0; mask below makes values irrelevant.
            t = jnp.pad(t, (0, host_pad))
        return t.reshape(rows8, _LANES)

    inputs = tuple(prep(t) for t in (raw, output, tm1, tm2, b))

    def kernel(raw_ref, output_ref, tm1_ref, tm2_ref, b_ref, psum_ref):
        r = raw_ref[...].astype(f32)
        pred = (output_ref[...].astype(f32) * tm1_ref[...].astype(f32)
                + b_ref[...].astype(f32) * (1.0 - tm2_ref[...].astype(f32)))
        absdiff = jnp.abs(r - pred)                        # (br, 128) f32

        # Mask elements past the true n (OOB rows of the last block and any
        # partial lane row).  Garbage/NaN in the masked branch is discarded
        # by the select.  (int32 indexing: fine for n < 2**31 elements.)
        row0 = pl.program_id(0) * br
        ridx = jax.lax.broadcasted_iota(jnp.int32, (br, _LANES), 0)
        lidx = jax.lax.broadcasted_iota(jnp.int32, (br, _LANES), 1)
        gidx = (row0 + ridx) * _LANES + lidx
        absdiff = jnp.where(gidx < n, absdiff, 0.0)

        # Layout-preserving reduction to a lane-dense (8, 128) partial sum.
        psum_ref[0] = absdiff.reshape(br // _SUBLANES, _SUBLANES, _LANES).sum(axis=0)

    # Double-buffered input footprint + headroom; keep v5e from tiling down.
    in_block_bytes = sum(2 * br * _LANES * t.dtype.itemsize for t in inputs)
    vmem_limit = max(32 << 20, in_block_bytes + (2 << 20))

    bytes_in = sum(int(t.size) * t.dtype.itemsize for t in inputs)
    cost = pl.CostEstimate(
        flops=6 * n,
        transcendentals=0,
        bytes_accessed=bytes_in + grid * _SUBLANES * _LANES * 4,
    )

    psums = pl.pallas_call(
        kernel,
        out_shape=jax.ShapeDtypeStruct((grid, _SUBLANES, _LANES), f32),
        grid_spec=pltpu.PrefetchScalarGridSpec(
            num_scalar_prefetch=0,
            grid=(grid,),
            in_specs=[pl.BlockSpec((br, _LANES), lambda i: (i, 0))] * 5,
            out_specs=pl.BlockSpec((1, _SUBLANES, _LANES), lambda i: (i, 0, 0)),
        ),
        compiler_params=pltpu.CompilerParams(
            dimension_semantics=("parallel",),
            vmem_limit_bytes=vmem_limit,
        ),
        cost_estimate=cost,
    )(*inputs)

    # Final tiny reduction + mean over the *true* element count.
    return jnp.sum(psums) / jnp.float32(n)


if __name__ == "__main__":
    key = jax.random.PRNGKey(0)
    k1, k2, k3, k4, k5 = jax.random.split(key, 5)
    shape = (2, 4, 16, 16)  # NCHW, small

    raw = jax.random.uniform(k1, shape, dtype=jnp.float32)
    output = jax.random.uniform(k2, shape, dtype=jnp.float32)
    tm1 = jax.random.uniform(k3, shape, dtype=jnp.float32)
    tm2 = jax.random.uniform(k4, shape, dtype=jnp.float32)
    b = jax.random.uniform(k5, shape, dtype=jnp.float32)

    loss = uifm_loss(raw, output, tm1, tm2, b)
    loss = jax.block_until_ready(loss)

    # Pure-JAX reference (mirrors the PyTorch module exactly).
    raw_hat = output * tm1 + b * (1.0 - tm2)
    expected = jnp.mean(jnp.abs(raw - raw_hat))

    assert jnp.allclose(loss, expected, rtol=1e-5, atol=1e-6), (
        f"mismatch: got {loss}, expected {expected}"
    )
    print("KERNEL_OK")
</pallas_src>

<mosaic_0001>
module attributes {stable_mosaic.version = 11 : i64} {
  func.func @kernel(%arg0: i32, %arg1: memref<16x128xf32, #tpu.memory_space<vmem>>, %arg2: memref<16x128xf32, #tpu.memory_space<vmem>>, %arg3: memref<16x128xf32, #tpu.memory_space<vmem>>, %arg4: memref<16x128xf32, #tpu.memory_space<vmem>>, %arg5: memref<16x128xf32, #tpu.memory_space<vmem>>, %arg6: memref<1x8x128xf32, #tpu.memory_space<vmem>>) attributes {dimension_semantics = [#tpu.dimension_semantics<parallel>], iteration_bounds = array<i64: 1>, scalar_prefetch = 0 : i64, scratch_operands = 0 : i64, tpu.core_type = #tpu.core_type<tc>, window_params = [{transform_indices = @transform_0, window_bounds = array<i64: 16, 128>}, {transform_indices = @transform_1, window_bounds = array<i64: 16, 128>}, {transform_indices = @transform_2, window_bounds = array<i64: 16, 128>}, {transform_indices = @transform_3, window_bounds = array<i64: 16, 128>}, {transform_indices = @transform_4, window_bounds = array<i64: 16, 128>}, {transform_indices = @transform_5, window_bounds = array<i64: 1, 8, 128>}]} {
    %c0 = arith.constant 0 : index
    %c0_0 = arith.constant 0 : index
    %0 = vector.load %arg1[%c0, %c0_0] : memref<16x128xf32, #tpu.memory_space<vmem>>, vector<16x128xf32>
    %c0_1 = arith.constant 0 : index
    %c0_2 = arith.constant 0 : index
    %1 = vector.load %arg2[%c0_1, %c0_2] : memref<16x128xf32, #tpu.memory_space<vmem>>, vector<16x128xf32>
    %c0_3 = arith.constant 0 : index
    %c0_4 = arith.constant 0 : index
    %2 = vector.load %arg3[%c0_3, %c0_4] : memref<16x128xf32, #tpu.memory_space<vmem>>, vector<16x128xf32>
    %3 = arith.mulf %1, %2 : vector<16x128xf32>
    %c0_5 = arith.constant 0 : index
    %c0_6 = arith.constant 0 : index
    %4 = vector.load %arg5[%c0_5, %c0_6] : memref<16x128xf32, #tpu.memory_space<vmem>>, vector<16x128xf32>
    %c0_7 = arith.constant 0 : index
    %c0_8 = arith.constant 0 : index
    %5 = vector.load %arg4[%c0_7, %c0_8] : memref<16x128xf32, #tpu.memory_space<vmem>>, vector<16x128xf32>
    %cst = arith.constant 1.000000e+00 : f32
    %6 = vector.broadcast %cst : f32 to vector<16x128xf32>
    %7 = arith.subf %6, %5 : vector<16x128xf32>
    %8 = arith.mulf %4, %7 : vector<16x128xf32>
    %9 = arith.addf %3, %8 : vector<16x128xf32>
    %10 = arith.subf %0, %9 : vector<16x128xf32>
    %11 = math.absf %10 : vector<16x128xf32>
    %c16_i32 = arith.constant 16 : i32
    %12 = arith.muli %arg0, %c16_i32 : i32
    %13 = tpu.iota {dimensions = array<i32: 0>} : vector<16x128xi32>
    %14 = tpu.iota {dimensions = array<i32: 1>} : vector<16x128xi32>
    %15 = vector.broadcast %12 : i32 to vector<16x128xi32>
    %16 = arith.addi %15, %13 : vector<16x128xi32>
    %c128_i32 = arith.constant 128 : i32
    %17 = vector.broadcast %c128_i32 : i32 to vector<16x128xi32>
    %18 = arith.muli %16, %17 : vector<16x128xi32>
    %19 = arith.addi %18, %14 : vector<16x128xi32>
    %c2048_i32 = arith.constant 2048 : i32
    %20 = vector.broadcast %c2048_i32 : i32 to vector<16x128xi32>
    %21 = arith.cmpi slt, %19, %20 : vector<16x128xi32>
    %cst_9 = arith.constant 0.000000e+00 : f32
    %22 = vector.broadcast %cst_9 : f32 to vector<16x128xf32>
    %23 = arith.select %21, %11, %22 : vector<16x128xi1>, vector<16x128xf32>
    %24 = vector.shape_cast %23 : vector<16x128xf32> to vector<2x8x128xf32>
    %cst_10 = arith.constant dense<0.000000e+00> : vector<8x128xf32>
    %25 = vector.multi_reduction <add>, %24, %cst_10 [0] : vector<2x8x128xf32> to vector<8x128xf32>
    %c0_11 = arith.constant 0 : index
    %c0_12 = arith.constant 0 : index
    %c0_13 = arith.constant 0 : index
    %26 = vector.load %arg6[%c0_11, %c0_12, %c0_13] : memref<1x8x128xf32, #tpu.memory_space<vmem>>, vector<1x8x128xf32>
    %27 = vector.shape_cast %26 : vector<1x8x128xf32> to vector<8x128xf32>
    %28 = vector.shape_cast %25 : vector<8x128xf32> to vector<1x8x128xf32>
    tpu.vector_store %arg6[%c0_11, %c0_12, %c0_13], %28 {strides = array<i32>} : memref<1x8x128xf32, #tpu.memory_space<vmem>>, vector<1x8x128xf32>,
    return
  }
  func.func @transform_0(%arg0: i32) -> (i32, i32) {
    %c0_i32 = arith.constant 0 : i32
    %c0_i32_0 = arith.constant 0 : i32
    return %arg0, %c0_i32 : i32, i32
  }
  func.func @transform_1(%arg0: i32) -> (i32, i32) {
    %c0_i32 = arith.constant 0 : i32
    %c0_i32_0 = arith.constant 0 : i32
    return %arg0, %c0_i32 : i32, i32
  }
  func.func @transform_2(%arg0: i32) -> (i32, i32) {
    %c0_i32 = arith.constant 0 : i32
    %c0_i32_0 = arith.constant 0 : i32
    return %arg0, %c0_i32 : i32, i32
  }
  func.func @transform_3(%arg0: i32) -> (i32, i32) {
    %c0_i32 = arith.constant 0 : i32
    %c0_i32_0 = arith.constant 0 : i32
    return %arg0, %c0_i32 : i32, i32
  }
  func.func @transform_4(%arg0: i32) -> (i32, i32) {
    %c0_i32 = arith.constant 0 : i32
    %c0_i32_0 = arith.constant 0 : i32
    return %arg0, %c0_i32 : i32, i32
  }
  func.func @transform_5(%arg0: i32) -> (i32, i32, i32) {
    %c0_i32 = arith.constant 0 : i32
    %c0_i32_0 = arith.constant 0 : i32
    %c0_i32_1 = arith.constant 0 : i32
    return %arg0, %c0_i32, %c0_i32_0 : i32, i32, i32
  }
}

</mosaic_0001>

<llo_original>
// kernel: tpu_custom_call.1
$region0: #{tpu_custom_call.1}
  #allocation0 [shape = 'u32[]', space=smem, size = 0x4, offset = 0x4, fixed_abs, tag = 'smem constant byte address 0x4 - core index']
  #allocation1 [shape = 'u32[144,128]{1,0:T(1,128)}', space=vmem, size = 0x12000, scoped, tag = 'internal scratch']
  %s0 = inlined_call_operand.hbm [shape: f32[16,128], index: 0, kind: input, shape index: {}]
  %s1 = inlined_call_operand.hbm [shape: f32[16,128], index: 1, kind: input, shape index: {}]
  %s2 = inlined_call_operand.hbm [shape: f32[16,128], index: 2, kind: input, shape index: {}]
  %s3 = inlined_call_operand.hbm [shape: f32[16,128], index: 3, kind: input, shape index: {}]
  %s4 = inlined_call_operand.hbm [shape: f32[16,128], index: 4, kind: input, shape index: {}]
  %s5 = inlined_call_operand.hbm [shape: f32[1,8,128], index: 5, kind: output, shape index: {}]
  %s6 = sld [smem:[#allocation0]]
  $region50: #{tpu_custom_call.1} parent=0
    _
  %s8 = ssub.s32 1, %s6
  %s9 = scalar_select 0, %s8, %s6
  $region1: #{tpu_custom_call.1} parent=0
    #allocation2 [shape = 'u8[8192]{0}', space=vmem, size = 0x2000, scoped, tag = 'input window, operand 0, single buffered']
    #allocation3 [shape = 's32[1]{0}', space=sflag, size = 0x4, scoped, tag = 'scoped memory for tpu_custom_call.1']
    #allocation4 [shape = 's32[1]{0}', space=sflag, size = 0x4, scoped, tag = 'scoped memory for tpu_custom_call.1']
    #allocation5 [shape = 'u8[8192]{0}', space=vmem, size = 0x2000, scoped, tag = 'input window, operand 1, single buffered']
    #allocation6 [shape = 's32[1]{0}', space=sflag, size = 0x4, scoped, tag = 'scoped memory for tpu_custom_call.1']
    #allocation7 [shape = 'u8[8192]{0}', space=vmem, size = 0x2000, scoped, tag = 'input window, operand 2, single buffered']
    #allocation8 [shape = 'u8[8192]{0}', space=vmem, size = 0x2000, scoped, tag = 'input window, operand 3, single buffered']
    #allocation9 [shape = 's32[1]{0}', space=sflag, size = 0x4, scoped, tag = 'scoped memory for tpu_custom_call.1']
    #allocation10 [shape = 'u8[8192]{0}', space=vmem, size = 0x2000, scoped, tag = 'input window, operand 4, single buffered']
    #allocation11 [shape = 'u8[4096]{0}', space=vmem, size = 0x1000, scoped, tag = 'output window, operand 0, single buffered']
    %10 = vsyncpa [#allocation3], 0
    %11 = vsyncpa [#allocation6], 0
    %12 = vsyncpa [#allocation9], 0
    %13 = vsyncpa [#allocation4], 0
    // Predicated region
    $region2: #{tpu_custom_call.1} parent=1 // pred_check
      _
    $region3: #{tpu_custom_call.1} parent=1 // pred_check_branch
      %15 = sbr.rel (0) target = $region5
    $region4: #{tpu_custom_call.1} parent=1 // pred_region
      %s17 = ssub.s32 256, 256
      %18 = vsyncadd [#allocation3], %s17
      %s19 = sshll.u32 [#allocation2], 4
      %s20 = int_to_ptr.vmem [resolvable:$true] %s19
      %25 = dma.hbm_to_vmem [thread:$0]  %s0, 256, %s20, [#allocation3], 128, 128, 8
    $region5: #{tpu_custom_call.1} parent=1 // pred_fallthru
      _
    // Predicated region
    $region6: #{tpu_custom_call.1} parent=1 // pred_check
      _
    $region7: #{tpu_custom_call.1} parent=1 // pred_check_branch
      %27 = sbr.rel (0) target = $region9
    $region8: #{tpu_custom_call.1} parent=1 // pred_region
      %s29 = ssub.s32 256, 256
      %30 = vsyncadd [#allocation6], %s29
      %s31 = sshll.u32 [#allocation5], 4
      %s32 = int_to_ptr.vmem [resolvable:$true] %s31
      %37 = dma.hbm_to_vmem [thread:$0]  %s1, 256, %s32, [#allocation6], 128, 128, 8
    $region9: #{tpu_custom_call.1} parent=1 // pred_fallthru
      _
    // Predicated region
    $region10: #{tpu_custom_call.1} parent=1 // pred_check
      _
    $region11: #{tpu_custom_call.1} parent=1 // pred_check_branch
      %39 = sbr.rel (0) target = $region13
    $region12: #{tpu_custom_call.1} parent=1 // pred_region
      %s41 = ssub.s32 256, 256
      %42 = vsyncadd [#allocation6], %s41
      %s43 = sshll.u32 [#allocation7], 4
      %s44 = int_to_ptr.vmem [resolvable:$true] %s43
      %49 = dma.hbm_to_vmem [thread:$0]  %s2, 256, %s44, [#allocation6], 128, 128, 8
    $region13: #{tpu_custom_call.1} parent=1 // pred_fallthru
      _
    // Predicated region
    $region14: #{tpu_custom_call.1} parent=1 // pred_check
      _
    $region15: #{tpu_custom_call.1} parent=1 // pred_check_branch
      %51 = sbr.rel (0) target = $region17
    $region16: #{tpu_custom_call.1} parent=1 // pred_region
      %s53 = ssub.s32 256, 256
      %54 = vsyncadd [#allocation9], %s53
      %s55 = sshll.u32 [#allocation8], 4
      %s56 = int_to_ptr.vmem [resolvable:$true] %s55
      %61 = dma.hbm_to_vmem [thread:$0]  %s3, 256, %s56, [#allocation9], 128, 128, 8
    $region17: #{tpu_custom_call.1} parent=1 // pred_fallthru
      _
    // Predicated region
    $region18: #{tpu_custom_call.1} parent=1 // pred_check
      _
    $region19: #{tpu_custom_call.1} parent=1 // pred_check_branch
      %63 = sbr.rel (0) target = $region21
    $region20: #{tpu_custom_call.1} parent=1 // pred_region
      %s65 = ssub.s32 256, 256
      %66 = vsyncadd [#allocation9], %s65
      %s67 = sshll.u32 [#allocation10], 4
      %s68 = int_to_ptr.vmem [resolvable:$true] %s67
      %73 = dma.hbm_to_vmem [thread:$0]  %s4, 256, %s68, [#allocation9], 128, 128, 8
    $region21: #{tpu_custom_call.1} parent=1 // pred_fallthru
      _
    // Predicated region
    $region22: #{tpu_custom_call.1} parent=1 // pred_check
      _
    $region23: #{tpu_custom_call.1} parent=1 // pred_check_branch
      %75 = sbr.rel (0) target = $region25
    $region24: #{tpu_custom_call.1} parent=1 // pred_region
      %76 = dma.done [#allocation3], 256
    $region25: #{tpu_custom_call.1} parent=1 // pred_fallthru
      _
    // Predicated region
    $region26: #{tpu_custom_call.1} parent=1 // pred_check
      _
    $region27: #{tpu_custom_call.1} parent=1 // pred_check_branch
      %78 = sbr.rel (0) target = $region29
    $region28: #{tpu_custom_call.1} parent=1 // pred_region
      %79 = dma.done [#allocation6], 256
    $region29: #{tpu_custom_call.1} parent=1 // pred_fallthru
      _
    // Predicated region
    $region30: #{tpu_custom_call.1} parent=1 // pred_check
      _
    $region31: #{tpu_custom_call.1} parent=1 // pred_check_branch
      %81 = sbr.rel (0) target = $region33
    $region32: #{tpu_custom_call.1} parent=1 // pred_region
      %82 = dma.done [#allocation6], 256
    $region33: #{tpu_custom_call.1} parent=1 // pred_fallthru
      _
    // Predicated region
    $region34: #{tpu_custom_call.1} parent=1 // pred_check
      _
    $region35: #{tpu_custom_call.1} parent=1 // pred_check_branch
      %84 = sbr.rel (0) target = $region37
    $region36: #{tpu_custom_call.1} parent=1 // pred_region
      %85 = dma.done [#allocation9], 256
    $region37: #{tpu_custom_call.1} parent=1 // pred_fallthru
      _
    // Predicated region
    $region38: #{tpu_custom_call.1} parent=1 // pred_check
      _
    $region39: #{tpu_custom_call.1} parent=1 // pred_check_branch
      %87 = sbr.rel (0) target = $region41
    $region40: #{tpu_custom_call.1} parent=1 // pred_region
      %88 = dma.done [#allocation9], 256
    $region41: #{tpu_custom_call.1} parent=1 // pred_fallthru
      _
    %v89 = vld [vmem:[#allocation2] sm:$0xff]
    %v90 = vld [vmem:[#allocation2 + $0x8] sm:$0xff]
    %v91 = vld [vmem:[#allocation5] sm:$0xff]
    %v92 = vld [vmem:[#allocation5 + $0x8] sm:$0xff]
    %v93 = vld [vmem:[#allocation7] sm:$0xff]
    %v94 = vld [vmem:[#allocation7 + $0x8] sm:$0xff]
    %v95 = vmul.f32 %v91, %v93
    %v96 = vmul.f32 %v92, %v94
    %v97 = vld [vmem:[#allocation10] sm:$0xff]
    %v98 = vld [vmem:[#allocation10 + $0x8] sm:$0xff]
    %v99 = vld [vmem:[#allocation8] sm:$0xff]
    %v100 = vld [vmem:[#allocation8 + $0x8] sm:$0xff]
    %v101 = vsub.f32 1.0, %v99
    %v102 = vsub.f32 1.0, %v100
    %v103 = vmul.f32 %v97, %v101
    %v104 = vmul.f32 %v98, %v102
    %v105 = vadd.f32 %v95, %v103
    %v106 = vadd.f32 %v96, %v104
    %v107 = vsub.f32 %v89, %v105
    %v108 = vsub.f32 %v90, %v106
    %v109 = vand.u32 2147483647, %v107
    %v110 = vand.u32 2147483647, %v108
    %s111 = smul.u32 0, 16
    %v112 = vlaneseq
    %v113 = vshrl.u32 %v112, 7
    %v114 = vadd.s32 %v113, 8
    %v115 = vlaneseq
    %v116 = vand.u32 %v115, 127
    %v117 = vstv %s111
    %v118 = vadd.s32 %v117, %v113
    %v119 = vadd.s32 %v117, %v114
    %v120 = vmul.u32 %v118, 128
    %v121 = vmul.u32 %v119, 128
    %v122 = vadd.s32 %v120, %v116
    %v123 = vadd.s32 %v121, %v116
    %vm124 = vcmp.lt.s32.totalorder %v122, 2048
    %vm125 = vcmp.lt.s32.totalorder %v123, 2048
    %v126 = vsel %vm124, %v109, 0.0
    %v127 = vsel %vm125, %v110, 0.0
    %v128 = vadd.f32 %v126, %v127
    %129 = vst [vmem:[#allocation11] sm:$0xff] %v128
    // Predicated region
    $region42: #{tpu_custom_call.1} parent=1 // pred_check
      _
    $region43: #{tpu_custom_call.1} parent=1 // pred_check_branch
      %131 = sbr.rel (0) target = $region45
    $region44: #{tpu_custom_call.1} parent=1 // pred_region
      %s133 = ssub.s32 128, 128
      %134 = vsyncadd [#allocation4], %s133
      %s136 = sshll.u32 [#allocation11], 4
      %s137 = int_to_ptr.vmem [resolvable:$true] %s136
      %139 = dma.vmem_to_hbm [thread:$0]  %s137, 128, %s5, [#allocation4]
    $region45: #{tpu_custom_call.1} parent=1 // pred_fallthru
      _
    // Predicated region
    $region46: #{tpu_custom_call.1} parent=1 // pred_check
      _
    $region47: #{tpu_custom_call.1} parent=1 // pred_check_branch
      %141 = sbr.rel (0) target = $region49
    $region48: #{tpu_custom_call.1} parent=1 // pred_region
      %142 = dma.done [#allocation4], 128
    $region49: #{tpu_custom_call.1} parent=1 // pred_fallthru
      _
    %143 = vsyncpa [#allocation3], 1
    %144 = vsyncpa [#allocation6], 1
    %145 = vsyncpa [#allocation9], 1
    %146 = vsyncpa [#allocation4], 1

</llo_original>
